<compile_context>
chip_gen: v7x
topology: tpu7x:2x2x1
jax: 0.10.0
libtpu: 0.0.40
codegen_flags: <defaults>
</compile_context>

<pallas_src>
import functools

import jax
import jax.numpy as jnp
from jax.experimental import pallas as pl
from jax.experimental.pallas import tpu as pltpu


def _kl_loss_kernel(x_ref, x1_ref, tgt_ref, out_ref, *,
                    padding_idx, n_rows, row_tile):
    i = pl.program_id(0)

    x = x_ref[...].astype(jnp.float32)      # (R, C)
    x1 = x1_ref[...].astype(jnp.float32)    # (R, C)

    # logsumexp pieces for both inputs (numerically stable).
    mx = jnp.max(x, axis=-1, keepdims=True)                 # (R, 1)
    m1 = jnp.max(x1, axis=-1, keepdims=True)                # (R, 1)
    zx = jnp.sum(jnp.exp(x - mx), axis=-1, keepdims=True)   # (R, 1)
    e1 = jnp.exp(x1 - m1)                                   # (R, C)
    z1 = jnp.sum(e1, axis=-1, keepdims=True)                # (R, 1)

    # sum_c p1*(log p1 - log p) with sum_c p1 == 1 folded in:
    #   (1/z1) * sum_c e1*(x1 - x) - (lse(x1) - lse(x))
    sed = jnp.sum(e1 * (x1 - x), axis=-1, keepdims=True)    # (R, 1)
    kl_row = sed / z1 - ((m1 + jnp.log(z1)) - (mx + jnp.log(zx)))  # (R, 1)

    # Mask padded targets; also mask the ragged tail beyond n_rows (branch is
    # only emitted when the tiling is actually ragged -- static Python check).
    # A select (not multiply) is used so NaN/garbage from edge-block reads
    # cannot leak into the accumulated sum.
    keep = tgt_ref[...] != padding_idx                      # (R, 1) bool
    if n_rows % row_tile != 0:
        row_ids = i * row_tile + jax.lax.broadcasted_iota(
            jnp.int32, (row_tile, 1), 0)
        keep = jnp.logical_and(keep, row_ids < n_rows)
    out_ref[...] = jnp.where(keep, kl_row, 0.0)


def _vmem_capacity_bytes():
    try:
        info = pltpu.get_tpu_info()
        cap = getattr(info, "vmem_capacity_bytes", None)
        if cap:
            return int(cap)
    except Exception:
        pass
    return 64 * 1024 * 1024   # conservative fallback (v7x physical VMEM)


def kl_loss(x, x1, target, *, size, padding_idx, normalize_length=False,
            row_tile=None, vmem_limit_bytes=None):
    """Pallas implementation of KLLoss.forward.

    x, x1: (batch, seqlen, size) float (f32 or bf16); target: (batch, seqlen).
    Returns a scalar float32.
    """
    assert x.shape[-1] == size
    batch_size = x.shape[0]

    x2d = x.reshape(-1, size)
    x12d = x1.reshape(-1, size)
    tgt2d = target.reshape(-1, 1).astype(jnp.int32)
    n_rows = x2d.shape[0]
    itemsize = x2d.dtype.itemsize

    # --- VMEM limit derived from the chip's real capacity -----------------
    if vmem_limit_bytes is None:
        cap = _vmem_capacity_bytes()
        vmem_limit_bytes = min((cap * 3) // 4, 100 * 1024 * 1024)
    vmem_limit_bytes = int(vmem_limit_bytes)

    # --- row-tile sizing against the true f32 working set -----------------
    if row_tile is None:
        # per-row bytes: 2 inputs x 2 pipeline buffers x itemsize,
        # ~5 live f32 per-element intermediates (casts, e1, products),
        # plus the lane-padded (x128) int32 target tile x 2 buffers.
        per_row_bytes = size * (4 * itemsize + 5 * 4) + 2 * 128 * 4
        budget = (vmem_limit_bytes * 3) // 4
        row_tile = budget // max(1, per_row_bytes)
    row_tile = int(max(8, min(int(row_tile), 8192)))

    # Keep >= 4 grid steps on large problems so the single "parallel" axis can
    # shard across both TensorCores on v7x (harmless on 1-TC v5e/v6e; skipped
    # for small problems to avoid needless grid-step overhead).
    quarter = (((n_rows + 3) // 4) + 7) // 8 * 8
    if quarter >= 512:
        row_tile = min(row_tile, quarter)

    row_tile = (row_tile // 8) * 8
    row_tile = min(row_tile, ((n_rows + 7) // 8) * 8)   # never tile past data
    row_tile = max(8, row_tile)
    # TODO(synk): class counts >= ~256K need a class-chunked online-logsumexp
    # grid axis to fit v7x's 64 MiB VMEM; not implemented here.

    n_tiles = (n_rows + row_tile - 1) // row_tile
    padded_rows = n_tiles * row_tile

    kernel = functools.partial(
        _kl_loss_kernel, padding_idx=padding_idx, n_rows=n_rows,
        row_tile=row_tile)

    cost = pl.CostEstimate(
        flops=10 * n_rows * size,
        transcendentals=2 * n_rows * size,
        bytes_accessed=(2 * n_rows * size * itemsize
                        + n_rows * 4 + padded_rows * 4))

    per_row_kl = pl.pallas_call(
        kernel,
        out_shape=jax.ShapeDtypeStruct((padded_rows, 1), jnp.float32),
        grid_spec=pltpu.PrefetchScalarGridSpec(
            num_scalar_prefetch=0,
            grid=(n_tiles,),
            in_specs=[
                pl.BlockSpec((row_tile, size), lambda i: (i, 0)),
                pl.BlockSpec((row_tile, size), lambda i: (i, 0)),
                pl.BlockSpec((row_tile, 1), lambda i: (i, 0)),
            ],
            out_specs=pl.BlockSpec((row_tile, 1), lambda i: (i, 0)),
        ),
        compiler_params=pltpu.CompilerParams(
            dimension_semantics=("parallel",),
            vmem_limit_bytes=vmem_limit_bytes),
        cost_estimate=cost,
    )(x2d, x12d, tgt2d)

    total_kl = jnp.sum(per_row_kl)

    # denominator (glue; mirrors the torch.no_grad() bookkeeping)
    ignore = target.reshape(-1) == padding_idx
    total = target.size - jnp.sum(ignore.astype(jnp.int32))
    if normalize_length:
        # guard against an all-padding batch (torch would give inf/nan)
        denom = jnp.maximum(total, 1).astype(jnp.float32)
    else:
        denom = jnp.float32(batch_size)
    return total_kl / denom


def _reference(x, x1, target, *, size, padding_idx, normalize_length=False):
    batch_size = x.shape[0]
    x2d = x.reshape(-1, size).astype(jnp.float32)
    x12d = x1.reshape(-1, size).astype(jnp.float32)
    tgt = target.reshape(-1)
    ignore = tgt == padding_idx
    total = tgt.shape[0] - jnp.sum(ignore.astype(jnp.int32))
    log_p = jax.nn.log_softmax(x2d, axis=1)
    p1 = jax.nn.softmax(x12d, axis=1)
    kl = p1 * (jnp.log(p1) - log_p)
    kl = jnp.where(ignore[:, None], 0.0, kl)
    denom = total if normalize_length else batch_size
    return jnp.sum(kl) / denom


if __name__ == "__main__":
    batch, seqlen, size = 2, 8, 32
    padding_idx = -1

    key = jax.random.PRNGKey(0)
    kx, kx1, kt, km = jax.random.split(key, 4)
    x = jax.random.normal(kx, (batch, seqlen, size), dtype=jnp.float32)
    x1 = jax.random.normal(kx1, (batch, seqlen, size), dtype=jnp.float32)
    target = jax.random.randint(kt, (batch, seqlen), 0, size, dtype=jnp.int32)
    # mark some positions as padding
    pad_mask = jax.random.bernoulli(km, 0.25, (batch, seqlen))
    target = jnp.where(pad_mask, padding_idx, target)

    out = kl_loss(x, x1, target, size=size, padding_idx=padding_idx,
                  normalize_length=False)
    out = jax.block_until_ready(out)

    ref = _reference(x, x1, target, size=size, padding_idx=padding_idx,
                     normalize_length=False)
    assert jnp.allclose(out, ref, rtol=1e-5, atol=1e-5), (out, ref)

    # also exercise the normalize_length=True path
    out_n = jax.block_until_ready(
        kl_loss(x, x1, target, size=size, padding_idx=padding_idx,
                normalize_length=True))
    ref_n = _reference(x, x1, target, size=size, padding_idx=padding_idx,
                       normalize_length=True)
    assert jnp.allclose(out_n, ref_n, rtol=1e-5, atol=1e-5), (out_n, ref_n)

    print("KERNEL_OK")
</pallas_src>

<mosaic_0001>
module attributes {stable_mosaic.version = 11 : i64} {
  func.func @_kl_loss_kernel(%arg0: i32, %arg1: memref<16x32xf32, #tpu.memory_space<vmem>>, %arg2: memref<16x32xf32, #tpu.memory_space<vmem>>, %arg3: memref<16x1xi32, #tpu.memory_space<vmem>>, %arg4: memref<16x1xf32, #tpu.memory_space<vmem>>) attributes {dimension_semantics = [#tpu.dimension_semantics<parallel>], iteration_bounds = array<i64: 1>, scalar_prefetch = 0 : i64, scratch_operands = 0 : i64, tpu.core_type = #tpu.core_type<tc>, window_params = [{transform_indices = @transform_0, window_bounds = array<i64: 16, 32>}, {transform_indices = @transform_1, window_bounds = array<i64: 16, 32>}, {transform_indices = @transform_2, window_bounds = array<i64: 16, 1>}, {transform_indices = @transform_3, window_bounds = array<i64: 16, 1>}]} {
    %c0 = arith.constant 0 : index
    %c0_0 = arith.constant 0 : index
    %0 = vector.load %arg1[%c0, %c0_0] : memref<16x32xf32, #tpu.memory_space<vmem>>, vector<16x32xf32>
    %c0_1 = arith.constant 0 : index
    %c0_2 = arith.constant 0 : index
    %1 = vector.load %arg2[%c0_1, %c0_2] : memref<16x32xf32, #tpu.memory_space<vmem>>, vector<16x32xf32>
    %cst = arith.constant dense<0xFF800000> : vector<16xf32>
    %2 = vector.multi_reduction <maximumf>, %0, %cst [1] : vector<16x32xf32> to vector<16xf32>
    %3 = vector.shape_cast %2 : vector<16xf32> to vector<16x1xf32>
    %cst_3 = arith.constant dense<0xFF800000> : vector<16xf32>
    %4 = vector.multi_reduction <maximumf>, %1, %cst_3 [1] : vector<16x32xf32> to vector<16xf32>
    %5 = vector.shape_cast %4 : vector<16xf32> to vector<16x1xf32>
    %6 = vector.broadcast %3 : vector<16x1xf32> to vector<16x32xf32>
    %7 = arith.subf %0, %6 : vector<16x32xf32>
    %8 = math.exp %7 : vector<16x32xf32>
    %cst_4 = arith.constant dense<0.000000e+00> : vector<16xf32>
    %9 = vector.multi_reduction <add>, %8, %cst_4 [1] : vector<16x32xf32> to vector<16xf32>
    %10 = vector.shape_cast %9 : vector<16xf32> to vector<16x1xf32>
    %11 = vector.broadcast %5 : vector<16x1xf32> to vector<16x32xf32>
    %12 = arith.subf %1, %11 : vector<16x32xf32>
    %13 = math.exp %12 : vector<16x32xf32>
    %cst_5 = arith.constant dense<0.000000e+00> : vector<16xf32>
    %14 = vector.multi_reduction <add>, %13, %cst_5 [1] : vector<16x32xf32> to vector<16xf32>
    %15 = vector.shape_cast %14 : vector<16xf32> to vector<16x1xf32>
    %16 = arith.subf %1, %0 : vector<16x32xf32>
    %17 = arith.mulf %13, %16 : vector<16x32xf32>
    %cst_6 = arith.constant dense<0.000000e+00> : vector<16xf32>
    %18 = vector.multi_reduction <add>, %17, %cst_6 [1] : vector<16x32xf32> to vector<16xf32>
    %19 = vector.shape_cast %18 : vector<16xf32> to vector<16x1xf32>
    %20 = arith.divf %19, %15 : vector<16x1xf32>
    %21 = math.log %15 : vector<16x1xf32>
    %22 = arith.addf %5, %21 : vector<16x1xf32>
    %23 = math.log %10 : vector<16x1xf32>
    %24 = arith.addf %3, %23 : vector<16x1xf32>
    %25 = arith.subf %22, %24 : vector<16x1xf32>
    %26 = arith.subf %20, %25 : vector<16x1xf32>
    %c0_7 = arith.constant 0 : index
    %c0_8 = arith.constant 0 : index
    %27 = vector.load %arg3[%c0_7, %c0_8] : memref<16x1xi32, #tpu.memory_space<vmem>>, vector<16x1xi32>
    %c-1_i32 = arith.constant -1 : i32
    %28 = vector.broadcast %c-1_i32 : i32 to vector<16x1xi32>
    %29 = arith.cmpi ne, %27, %28 : vector<16x1xi32>
    %cst_9 = arith.constant 0.000000e+00 : f32
    %30 = vector.broadcast %cst_9 : f32 to vector<16x1xf32>
    %31 = arith.select %29, %26, %30 : vector<16x1xi1>, vector<16x1xf32>
    %c0_10 = arith.constant 0 : index
    %c0_11 = arith.constant 0 : index
    %32 = vector.load %arg4[%c0_10, %c0_11] : memref<16x1xf32, #tpu.memory_space<vmem>>, vector<16x1xf32>
    tpu.vector_store %arg4[%c0_10, %c0_11], %31 {strides = array<i32>} : memref<16x1xf32, #tpu.memory_space<vmem>>, vector<16x1xf32>,
    return
  }
  func.func @transform_0(%arg0: i32) -> (i32, i32) {
    %c0_i32 = arith.constant 0 : i32
    %c0_i32_0 = arith.constant 0 : i32
    return %arg0, %c0_i32 : i32, i32
  }
  func.func @transform_1(%arg0: i32) -> (i32, i32) {
    %c0_i32 = arith.constant 0 : i32
    %c0_i32_0 = arith.constant 0 : i32
    return %arg0, %c0_i32 : i32, i32
  }
  func.func @transform_2(%arg0: i32) -> (i32, i32) {
    %c0_i32 = arith.constant 0 : i32
    %c0_i32_0 = arith.constant 0 : i32
    return %arg0, %c0_i32 : i32, i32
  }
  func.func @transform_3(%arg0: i32) -> (i32, i32) {
    %c0_i32 = arith.constant 0 : i32
    %c0_i32_0 = arith.constant 0 : i32
    return %arg0, %c0_i32 : i32, i32
  }
}

</mosaic_0001>

<llo_original>
// kernel: tpu_custom_call.1
$region0: #{tpu_custom_call.1}
  #allocation0 [shape = 'u32[]', space=smem, size = 0x4, offset = 0x4, fixed_abs, tag = 'smem constant byte address 0x4 - core index']
  #allocation1 [shape = 'u32[144,128]{1,0:T(1,128)}', space=vmem, size = 0x12000, scoped, tag = 'internal scratch']
  %s0 = inlined_call_operand.vmem [shape: f32[16,32], index: 0, kind: input, shape index: {}]
  %s1 = inlined_call_operand.hbm [shape: f32[16,32], index: 1, kind: input, shape index: {}]
  %s2 = inlined_call_operand.vmem [shape: s32[16,1], index: 2, kind: input, shape index: {}]
  %s3 = inlined_call_operand.vmem [shape: f32[16,1], index: 3, kind: output, shape index: {}]
  %s4 = sld [smem:[#allocation0]]
  $region26: #{tpu_custom_call.1} parent=0
    _
  %s6 = ssub.s32 1, %s4
  %s7 = scalar_select 0, %s6, %s4
  $region1: #{tpu_custom_call.1} parent=0
    #allocation2 [shape = 'u8[8192]{0}', space=vmem, size = 0x2000, scoped, tag = 'input window, operand 1, single buffered']
    #allocation3 [shape = 's32[1]{0}', space=sflag, size = 0x4, scoped, tag = 'scoped memory for tpu_custom_call.1']
    %8 = vsyncpa [#allocation3], 0
    // Predicated region
    $region2: #{tpu_custom_call.1} parent=1 // pred_check
      _
    $region3: #{tpu_custom_call.1} parent=1 // pred_check_branch
      %10 = sbr.rel (0) target = $region5
    $region4: #{tpu_custom_call.1} parent=1 // pred_region
      _
    $region5: #{tpu_custom_call.1} parent=1 // pred_fallthru
      _
    // Predicated region
    $region6: #{tpu_custom_call.1} parent=1 // pred_check
      _
    $region7: #{tpu_custom_call.1} parent=1 // pred_check_branch
      %12 = sbr.rel (0) target = $region9
    $region8: #{tpu_custom_call.1} parent=1 // pred_region
      %s14 = ssub.s32 256, 256
      %15 = vsyncadd [#allocation3], %s14
      %s16 = sshll.u32 [#allocation2], 4
      %s17 = int_to_ptr.vmem [resolvable:$true] %s16
      %22 = dma.hbm_to_vmem [thread:$0]  %s1, 256, %s17, [#allocation3], 128, 128, 8
    $region9: #{tpu_custom_call.1} parent=1 // pred_fallthru
      _
    // Predicated region
    $region10: #{tpu_custom_call.1} parent=1 // pred_check
      _
    $region11: #{tpu_custom_call.1} parent=1 // pred_check_branch
      %24 = sbr.rel (0) target = $region13
    $region12: #{tpu_custom_call.1} parent=1 // pred_region
      _
    $region13: #{tpu_custom_call.1} parent=1 // pred_fallthru
      _
    // Predicated region
    $region14: #{tpu_custom_call.1} parent=1 // pred_check
      _
    $region15: #{tpu_custom_call.1} parent=1 // pred_check_branch
      %26 = sbr.rel (0) target = $region17
    $region16: #{tpu_custom_call.1} parent=1 // pred_region
      %27 = dma.done [#allocation3], 256
    $region17: #{tpu_custom_call.1} parent=1 // pred_fallthru
      _
    %v28 = vld [vmem:[%s0] sm:$0xff]
    %v29 = vld [vmem:[%s0 + $0x8] sm:$0xff]
    %v30 = vld [vmem:[#allocation2] sm:$0xff]
    %v31 = vld [vmem:[#allocation2 + $0x8] sm:$0xff]
    %vm32 = vcmask 261120
    %v33 = vsel %vm32, %v28, -inf
    %34 = vmax.xlane.f32.xlu0 %v33
    %v35 = vpop.xlane.xlu0 %34
    %v36 = vsel %vm32, %v29, -inf
    %37 = vmax.xlane.f32.xlu0 %v36
    %v38 = vpop.xlane.xlu0 %37
    %v39 = vsel %vm32, %v30, -inf
    %40 = vmax.xlane.f32.xlu0 %v39
    %v41 = vpop.xlane.xlu0 %40
    %v42 = vsel %vm32, %v31, -inf
    %43 = vmax.xlane.f32.xlu0 %v42
    %v44 = vpop.xlane.xlu0 %43
    %v45 = vsub.f32 %v28, %v35
    %v46 = vsub.f32 %v29, %v38
    %v47 = vmul.f32 %v45, 1.442695
    %v48 = vpow.pop %v47
    %v49 = vmul.f32 %v46, 1.442695
    %v50 = vpow.pop %v49
    %v51 = vsel %vm32, %v48, 0.0
    %52 = vadd.xlane.f32.xlu0 %v51
    %v53 = vpop.xlane.xlu0 %52
    %v54 = vsel %vm32, %v50, 0.0
    %55 = vadd.xlane.f32.xlu0 %v54
    %v56 = vpop.xlane.xlu0 %55
    %v57 = vsub.f32 %v30, %v41
    %v58 = vsub.f32 %v31, %v44
    %v59 = vmul.f32 %v57, 1.442695
    %v60 = vpow.pop %v59
    %v61 = vmul.f32 %v58, 1.442695
    %v62 = vpow.pop %v61
    %v63 = vsel %vm32, %v60, 0.0
    %64 = vadd.xlane.f32.xlu0 %v63
    %v65 = vpop.xlane.xlu0 %64
    %v66 = vsel %vm32, %v62, 0.0
    %67 = vadd.xlane.f32.xlu0 %v66
    %v68 = vpop.xlane.xlu0 %67
    %v69 = vsub.f32 %v30, %v28
    %v70 = vsub.f32 %v31, %v29
    %v71 = vmul.f32 %v60, %v69
    %v72 = vmul.f32 %v62, %v70
    %v73 = vsel %vm32, %v71, 0.0
    %74 = vadd.xlane.f32.xlu0 %v73
    %v75 = vpop.xlane.xlu0 %74
    %v76 = vsel %vm32, %v72, 0.0
    %77 = vadd.xlane.f32.xlu0 %v76
    %v78 = vpop.xlane.xlu0 %77
    %v79 = vrcp.pop %v65
    %v80 = vmul.f32 %v75, %v79
    %v81 = vrcp.pop %v68
    %v82 = vmul.f32 %v78, %v81
    %v83 = vlog2.pop %v65
    %v84 = vmul.f32 %v83, 0.6931472
    %v85 = vlog2.pop %v68
    %v86 = vmul.f32 %v85, 0.6931472
    %v87 = vadd.f32 %v41, %v84
    %v88 = vadd.f32 %v44, %v86
    %v89 = vlog2.pop %v53
    %v90 = vmul.f32 %v89, 0.6931472
    %v91 = vlog2.pop %v56
    %v92 = vmul.f32 %v91, 0.6931472
    %v93 = vadd.f32 %v35, %v90
    %v94 = vadd.f32 %v38, %v92
    %v95 = vsub.f32 %v87, %v93
    %v96 = vsub.f32 %v88, %v94
    %v97 = vsub.f32 %v80, %v95
    %v98 = vsub.f32 %v82, %v96
    %v99 = vld [vmem:[%s2] sm:$0xff]
    %v100 = vld [vmem:[%s2 + $0x8] sm:$0xff]
    %vm101 = vcmp.ne.s32.totalorder %v99, 4294967295
    %vm102 = vcmp.ne.s32.totalorder %v100, 4294967295
    %v103 = vsel %vm101, %v97, 0.0
    %v104 = vsel %vm102, %v98, 0.0
    %vm105 = vcmask 7168
    %106 = vst.msk [vmem:[%s3] sm:$0xff] %vm105, %v103
    %107 = vst.msk [vmem:[%s3 + $0x8] sm:$0xff] %vm105, %v104
    // Predicated region
    $region18: #{tpu_custom_call.1} parent=1 // pred_check
      _
    $region19: #{tpu_custom_call.1} parent=1 // pred_check_branch
      %109 = sbr.rel (0) target = $region21
    $region20: #{tpu_custom_call.1} parent=1 // pred_region
      _
    $region21: #{tpu_custom_call.1} parent=1 // pred_fallthru
      _
    // Predicated region
    $region22: #{tpu_custom_call.1} parent=1 // pred_check
      _
    $region23: #{tpu_custom_call.1} parent=1 // pred_check_branch
      %111 = sbr.rel (0) target = $region25
    $region24: #{tpu_custom_call.1} parent=1 // pred_region
      _
    $region25: #{tpu_custom_call.1} parent=1 // pred_fallthru
      _
    %112 = vsyncpa [#allocation3], 1

</llo_original>
